<compile_context>
chip_gen: v7x
topology: tpu7x:2x2x1
jax: 0.10.0
libtpu: 0.0.40
codegen_flags: <defaults>
</compile_context>

<pallas_src>
import jax
import jax.numpy as jnp
from jax.experimental import pallas as pl
from jax.experimental.pallas import tpu as pltpu

KH = KW = 3  # kernel_size=3, padding=1 ("same")


def _tap_accumulate(bases, w_ref, not_first, not_last, C, T, cdt):
    """9 accumulating (2C, C) @ (C, T) dots (f32 accumulation).

    bases = (row_above, same_row, row_below) views, each (C, T) in the input
    dtype.  Column shifts are pltpu.roll by +-1 with column-edge masks; the
    roll wrap-around element always lands on a masked (image-edge) column
    because tile boundaries coincide with row boundaries.
    """
    acc = jnp.zeros((2 * C, T), jnp.float32)
    for kh in range(KH):
        base = bases[kh]
        for kw in range(KW):
            if kw == 0:          # tap reads column c-1 -> rotate right by 1
                sl = jnp.where(not_first, pltpu.roll(base, shift=1, axis=1), 0.0)
            elif kw == KW - 1:   # tap reads column c+1 -> rotate left by 1
                sl = jnp.where(not_last, pltpu.roll(base, shift=T - 1, axis=1), 0.0)
            else:
                sl = base
            k = kh * KW + kw
            acc = acc + jnp.dot(w_ref[k], sl.astype(cdt),
                                preferred_element_type=jnp.float32)
    return acc


def _make_single_tile_kernel(C, H, W, cdt):
    """Whole image per grid step (toy sizes / W not lane-aligned): row shifts
    via pltpu.roll over the flat spatial axis + row-edge masks, no halos."""
    HW = H * W

    def kernel(x_ref, w_ref, b_ref, gamma_ref, beta_ref):
        x = x_ref[0]                                             # (C, HW)
        flat = jax.lax.broadcasted_iota(jnp.int32, (1, HW), 1)   # small mask rows
        col = flat % W
        not_first = col != 0
        not_last = col != (W - 1)
        not_top = flat >= W           # a row above exists
        not_bot = flat < (HW - W)     # a row below exists
        x_up = jnp.where(not_top, pltpu.roll(x, shift=W, axis=1), 0.0)
        x_dn = jnp.where(not_bot, pltpu.roll(x, shift=HW - W, axis=1), 0.0)
        acc = _tap_accumulate((x_up, x, x_dn), w_ref, not_first, not_last, C, HW, cdt)
        out = acc + b_ref[...]                                   # (2C, 1) broadcast
        gamma_ref[0] = out[:C].astype(gamma_ref.dtype)
        beta_ref[0] = out[C:].astype(beta_ref.dtype)

    return kernel


def _make_tiled_kernel(C, W, T, cdt):
    """rows_per_tile = T // W complete image rows per grid step; halo strips
    carry the last row of the previous tile / first row of the next tile."""
    R = T // W

    def kernel(x_ref, xl_ref, xr_ref, w_ref, b_ref, gamma_ref, beta_ref):
        t = pl.program_id(1)
        nt = pl.num_programs(1)
        x = x_ref[0]                                             # (C, T)
        # Halo strips; zero at the image edges (top of first / bottom of last tile).
        xl = jnp.where(t > 0, xl_ref[0], 0.0)                    # (C, W)
        xr = jnp.where(t < nt - 1, xr_ref[0], 0.0)               # (C, W)
        if R == 1:
            x_up, x_dn = xl, xr
        else:
            # Lane-aligned slices + concats (W, T multiples of 128): cheap.
            x_up = jnp.concatenate([xl, x[:, :T - W]], axis=1)   # row above
            x_dn = jnp.concatenate([x[:, W:], xr], axis=1)       # row below
        col = jax.lax.broadcasted_iota(jnp.int32, (1, T), 1) % W
        not_first = col != 0
        not_last = col != (W - 1)
        acc = _tap_accumulate((x_up, x, x_dn), w_ref, not_first, not_last, C, T, cdt)
        out = acc + b_ref[...]
        gamma_ref[0] = out[:C].astype(gamma_ref.dtype)
        beta_ref[0] = out[C:].astype(beta_ref.dtype)

    return kernel


def spade_forward(x_nchw, w_gamma, b_gamma, w_beta, b_beta, *,
                  matmul_dtype=jnp.bfloat16, max_tile_rows=None):
    """SPADE.forward: returns (gamma, beta), both NCHW like the PyTorch module.

    x_nchw : (N, C, H, W) float32
    w_*    : (3, 3, C, C) float32 HWIO  (w_hwio[kh,kw,i,o] == w_torch[o,i,kh,kw])
    b_*    : (C,)         float32
    matmul_dtype : MXU operand dtype (default bf16; accumulation stays f32).
    max_tile_rows: optional cap on image rows per spatial tile (testing/tuning).
    """
    N, C, H, W = x_nchw.shape
    HW = H * W
    in_dtype = x_nchw.dtype
    itemsize = jnp.dtype(in_dtype).itemsize
    cdt = jnp.dtype(matmul_dtype)

    # Free contiguous reshape: no transpose, no pad, no extra HBM round trip.
    x_flat = x_nchw.reshape(N, C, HW)

    # Fuse gamma/beta convs once in the wrapper: (9, 2C, C) per-tap matrices,
    # rows = [gamma_0..C-1, beta_0..C-1], cast to the MXU operand dtype ONCE.
    w_cat = jnp.concatenate([w_gamma, w_beta], axis=-1)                 # (3,3,C,2C)
    w9 = jnp.transpose(w_cat.reshape(KH * KW, C, 2 * C), (0, 2, 1)).astype(cdt)
    b_cat = jnp.concatenate([b_gamma, b_beta]).reshape(2 * C, 1).astype(jnp.float32)

    # Chip-aware VMEM budget (v7x: 64 MiB/TC; v5e/v6e: 128 MiB).
    try:
        vmem_cap = int(pltpu.get_tpu_info().vmem_capacity_bytes)
    except Exception:
        vmem_cap = 64 * 1024 * 1024          # conservative (v7x) fallback
    budget = int(vmem_cap * 0.55)

    def footprint(T):
        # Double-buffered pipeline blocks + in-kernel temporaries per grid step.
        blocks = 2 * C * T * itemsize                       # x main (x2 buffers)
        blocks += 4 * C * W * itemsize                      # 2 halo strips (x2)
        blocks += 4 * C * T * itemsize                      # gamma + beta (x2 each)
        blocks += 2 * (w9.size * cdt.itemsize + b_cat.size * 4)
        temps = 2 * C * T * itemsize                        # x_up, x_dn
        temps += 2 * C * T * cdt.itemsize                   # tap slices in flight
        temps += 2 * C * T * 4                              # f32 accumulator
        temps += 4 * C * T * 4                              # f32 out + cast headroom
        return blocks + temps

    use_tiling = (W % 128 == 0) and (HW > W)
    if use_tiling:
        max_rows = max(1, min(H, 16384 // W))               # keep tiles pipeline-friendly
        if max_tile_rows is not None:
            max_rows = max(1, min(max_rows, int(max_tile_rows)))
        rows = 1
        for r in range(1, H + 1):
            if H % r == 0 and r <= max_rows and footprint(r * W) <= budget:
                rows = r
        T = rows * W
        num_tiles = H // rows
        R = rows
        kernel = _make_tiled_kernel(C, W, T, cdt)
        grid = (N, num_tiles)
        in_specs = [
            pl.BlockSpec((1, C, T), lambda n, t: (n, 0, t)),
            # last image row of the previous tile (clamped; zeroed in-kernel at t==0)
            pl.BlockSpec((1, C, W), lambda n, t: (n, 0, jnp.maximum(t * R - 1, 0))),
            # first image row of the next tile (clamped; zeroed in-kernel at t==last)
            pl.BlockSpec((1, C, W), lambda n, t: (n, 0, jnp.minimum((t + 1) * R, H - 1))),
            pl.BlockSpec((KH * KW, 2 * C, C), lambda n, t: (0, 0, 0)),
            pl.BlockSpec((2 * C, 1), lambda n, t: (0, 0)),
        ]
        out_specs = [
            pl.BlockSpec((1, C, T), lambda n, t: (n, 0, t)),
            pl.BlockSpec((1, C, T), lambda n, t: (n, 0, t)),
        ]
        operands = (x_flat, x_flat, x_flat, w9, b_cat)
        dim_sem = ("parallel", "parallel")
        need = footprint(T)
    else:
        # Toy / unaligned-W path: whole image per grid step, roll-based halos.
        kernel = _make_single_tile_kernel(C, H, W, cdt)
        grid = (N,)
        in_specs = [
            pl.BlockSpec((1, C, HW), lambda n: (n, 0, 0)),
            pl.BlockSpec((KH * KW, 2 * C, C), lambda n: (0, 0, 0)),
            pl.BlockSpec((2 * C, 1), lambda n: (0, 0)),
        ]
        out_specs = [
            pl.BlockSpec((1, C, HW), lambda n: (n, 0, 0)),
            pl.BlockSpec((1, C, HW), lambda n: (n, 0, 0)),
        ]
        operands = (x_flat, w9, b_cat)
        dim_sem = ("parallel",)
        need = footprint(HW)

    # Never clamp below the real block requirement; cap at physical VMEM.
    vmem_limit = int(max(need + (8 << 20), 32 << 20))
    vmem_limit = int(min(vmem_limit, int(vmem_cap * 0.94)))

    flops = 2 * N * HW * (KH * KW * C) * (2 * C)
    bytes_accessed = int(x_flat.size * itemsize + 2 * N * C * HW * itemsize
                         + w9.size * cdt.itemsize + b_cat.size * 4)
    cost = pl.CostEstimate(flops=flops, transcendentals=0,
                           bytes_accessed=bytes_accessed)

    gamma_flat, beta_flat = pl.pallas_call(
        kernel,
        out_shape=(
            jax.ShapeDtypeStruct((N, C, HW), in_dtype),
            jax.ShapeDtypeStruct((N, C, HW), in_dtype),
        ),
        grid_spec=pltpu.PrefetchScalarGridSpec(
            num_scalar_prefetch=0,
            grid=grid,
            in_specs=in_specs,
            out_specs=out_specs,
        ),
        compiler_params=pltpu.CompilerParams(
            dimension_semantics=dim_sem,
            vmem_limit_bytes=vmem_limit),
        cost_estimate=cost,
    )(*operands)

    # Free reshapes back to NCHW images.
    return gamma_flat.reshape(N, C, H, W), beta_flat.reshape(N, C, H, W)


def _conv_ref(x_nchw, w_hwio, bias):
    out = jax.lax.conv_general_dilated(
        x_nchw, w_hwio, window_strides=(1, 1), padding="SAME",
        dimension_numbers=("NCHW", "HWIO", "NCHW"))
    return out + bias[None, :, None, None]


def _init_params(key, C):
    # nn.init.normal_(weight, std=0.01); default uniform bias init.
    k_wg, k_bg, k_wb, k_bb = jax.random.split(key, 4)
    w_gamma = 0.01 * jax.random.normal(k_wg, (KH, KW, C, C), dtype=jnp.float32)
    w_beta = 0.01 * jax.random.normal(k_wb, (KH, KW, C, C), dtype=jnp.float32)
    bound = 1.0 / float(jnp.sqrt(C * KH * KW))
    b_gamma = jax.random.uniform(k_bg, (C,), jnp.float32, -bound, bound)
    b_beta = jax.random.uniform(k_bb, (C,), jnp.float32, -bound, bound)
    return w_gamma, b_gamma, w_beta, b_beta


if __name__ == "__main__":
    key = jax.random.PRNGKey(0)

    # 1) Toy module shapes (single-tile path), exact-ish f32 check.
    for C in (4, 8):
        kx, kp, key = jax.random.split(key, 3)
        x = jax.random.normal(kx, (2, C, 16, 16), dtype=jnp.float32)
        wg, bg, wb, bb = _init_params(kp, C)
        gamma, beta = spade_forward(x, wg, bg, wb, bb, matmul_dtype=jnp.float32)
        jax.block_until_ready((gamma, beta))
        gr, br = _conv_ref(x, wg, bg), _conv_ref(x, wb, bb)
        assert jnp.allclose(gamma, gr, atol=1e-4, rtol=1e-4), f"gamma mismatch C={C}"
        assert jnp.allclose(beta, br, atol=1e-4, rtol=1e-4), f"beta mismatch C={C}"

    # 2) Tiled spatial-grid path with halo exchange (f32 check, 1 and 2 rows/tile).
    for rows in (1, 2):
        kx, kp, key = jax.random.split(key, 3)
        C, H, W = 8, 8, 128
        x = jax.random.normal(kx, (1, C, H, W), dtype=jnp.float32)
        wg, bg, wb, bb = _init_params(kp, C)
        gamma, beta = spade_forward(x, wg, bg, wb, bb,
                                    matmul_dtype=jnp.float32, max_tile_rows=rows)
        jax.block_until_ready((gamma, beta))
        gr, br = _conv_ref(x, wg, bg), _conv_ref(x, wb, bb)
        assert jnp.allclose(gamma, gr, atol=1e-4, rtol=1e-4), f"gamma mismatch rows={rows}"
        assert jnp.allclose(beta, br, atol=1e-4, rtol=1e-4), f"beta mismatch rows={rows}"

    # 3) Default bf16-MXU operands (f32 accumulation), loose tolerance.
    kx, kp, key = jax.random.split(key, 3)
    C, H, W = 8, 8, 128
    x = jax.random.normal(kx, (2, C, H, W), dtype=jnp.float32)
    wg, bg, wb, bb = _init_params(kp, C)
    gamma, beta = spade_forward(x, wg, bg, wb, bb, max_tile_rows=2)
    jax.block_until_ready((gamma, beta))
    gr, br = _conv_ref(x, wg, bg), _conv_ref(x, wb, bb)
    assert jnp.allclose(gamma, gr, atol=1e-2, rtol=1e-1), "gamma mismatch (bf16)"
    assert jnp.allclose(beta, br, atol=1e-2, rtol=1e-1), "beta mismatch (bf16)"

    print("KERNEL_OK")
</pallas_src>

<mosaic_0001>
module attributes {stable_mosaic.version = 11 : i64} {
  func.func @kernel(%arg0: i32, %arg1: memref<1x4x256xf32, #tpu.memory_space<vmem>>, %arg2: memref<9x8x4xf32, #tpu.memory_space<vmem>>, %arg3: memref<8x1xf32, #tpu.memory_space<vmem>>, %arg4: memref<1x4x256xf32, #tpu.memory_space<vmem>>, %arg5: memref<1x4x256xf32, #tpu.memory_space<vmem>>) attributes {dimension_semantics = [#tpu.dimension_semantics<parallel>], iteration_bounds = array<i64: 2>, scalar_prefetch = 0 : i64, scratch_operands = 0 : i64, tpu.core_type = #tpu.core_type<tc>, window_params = [{transform_indices = @transform_0, window_bounds = array<i64: 1, 4, 256>}, {pipeline_mode = #tpu.pipeline_mode<synchronous>, transform_indices = @transform_1, window_bounds = array<i64: 9, 8, 4>}, {pipeline_mode = #tpu.pipeline_mode<synchronous>, transform_indices = @transform_2, window_bounds = array<i64: 8, 1>}, {transform_indices = @transform_3, window_bounds = array<i64: 1, 4, 256>}, {transform_indices = @transform_4, window_bounds = array<i64: 1, 4, 256>}]} {
    %c0 = arith.constant 0 : index
    %c0_0 = arith.constant 0 : index
    %c0_1 = arith.constant 0 : index
    %0 = vector.load %arg1[%c0, %c0_0, %c0_1] : memref<1x4x256xf32, #tpu.memory_space<vmem>>, vector<1x4x256xf32>
    %1 = vector.shape_cast %0 : vector<1x4x256xf32> to vector<4x256xf32>
    %2 = tpu.iota {dimensions = array<i32: 1>} : vector<1x256xi32>
    %c16_i32 = arith.constant 16 : i32
    %c0_i32 = arith.constant 0 : i32
    %3 = arith.cmpi eq, %c16_i32, %c0_i32 : i32
    %c1_i32 = arith.constant 1 : i32
    %4 = arith.select %3, %c1_i32, %c16_i32 : i32
    %5 = vector.broadcast %4 : i32 to vector<1x256xi32>
    %6 = arith.remsi %2, %5 : vector<1x256xi32>
    %c0_i32_2 = arith.constant 0 : i32
    %7 = vector.broadcast %c0_i32_2 : i32 to vector<1x256xi32>
    %8 = arith.cmpi ne, %6, %7 : vector<1x256xi32>
    %c0_i32_3 = arith.constant 0 : i32
    %9 = vector.broadcast %c0_i32_3 : i32 to vector<1x256xi32>
    %10 = arith.cmpi slt, %6, %9 : vector<1x256xi32>
    %c0_i32_4 = arith.constant 0 : i32
    %11 = arith.cmpi slt, %4, %c0_i32_4 : i32
    %12 = vector.broadcast %11 : i1 to vector<1x256xi1>
    %13 = vector.broadcast %12 : vector<1x256xi1> to vector<1x256xi1>
    %14 = arith.xori %10, %13 : vector<1x256xi1>
    %15 = arith.andi %14, %8 : vector<1x256xi1>
    %16 = vector.broadcast %4 : i32 to vector<1x256xi32>
    %17 = arith.addi %6, %16 : vector<1x256xi32>
    %18 = arith.select %15, %17, %6 : vector<1x256xi1>, vector<1x256xi32>
    %c0_i32_5 = arith.constant 0 : i32
    %19 = vector.broadcast %c0_i32_5 : i32 to vector<1x256xi32>
    %20 = arith.cmpi ne, %18, %19 : vector<1x256xi32>
    %c15_i32 = arith.constant 15 : i32
    %21 = vector.broadcast %c15_i32 : i32 to vector<1x256xi32>
    %22 = arith.cmpi ne, %18, %21 : vector<1x256xi32>
    %c16_i32_6 = arith.constant 16 : i32
    %23 = vector.broadcast %c16_i32_6 : i32 to vector<1x256xi32>
    %24 = arith.cmpi sge, %2, %23 : vector<1x256xi32>
    %c240_i32 = arith.constant 240 : i32
    %25 = vector.broadcast %c240_i32 : i32 to vector<1x256xi32>
    %26 = arith.cmpi slt, %2, %25 : vector<1x256xi32>
    %c16_i32_7 = arith.constant 16 : i32
    %27 = tpu.dynamic_rotate %1 by %c16_i32_7 dim 1 : vector<4x256xf32>, i32 -> vector<4x256xf32>
    %cst = arith.constant 0.000000e+00 : f32
    %28 = vector.shape_cast %24 : vector<1x256xi1> to vector<1x256xi1>
    %29 = vector.broadcast %28 : vector<1x256xi1> to vector<4x256xi1>
    %30 = vector.broadcast %cst : f32 to vector<4x256xf32>
    %31 = arith.select %29, %27, %30 : vector<4x256xi1>, vector<4x256xf32>
    %c240_i32_8 = arith.constant 240 : i32
    %32 = tpu.dynamic_rotate %1 by %c240_i32_8 dim 1 : vector<4x256xf32>, i32 -> vector<4x256xf32>
    %cst_9 = arith.constant 0.000000e+00 : f32
    %33 = vector.shape_cast %26 : vector<1x256xi1> to vector<1x256xi1>
    %34 = vector.broadcast %33 : vector<1x256xi1> to vector<4x256xi1>
    %35 = vector.broadcast %cst_9 : f32 to vector<4x256xf32>
    %36 = arith.select %34, %32, %35 : vector<4x256xi1>, vector<4x256xf32>
    %cst_10 = arith.constant 0.000000e+00 : f32
    %37 = vector.broadcast %cst_10 : f32 to vector<8x256xf32>
    %c1_i32_11 = arith.constant 1 : i32
    %38 = tpu.dynamic_rotate %31 by %c1_i32_11 dim 1 : vector<4x256xf32>, i32 -> vector<4x256xf32>
    %cst_12 = arith.constant 0.000000e+00 : f32
    %39 = vector.shape_cast %20 : vector<1x256xi1> to vector<1x256xi1>
    %40 = vector.broadcast %39 : vector<1x256xi1> to vector<4x256xi1>
    %41 = vector.broadcast %cst_12 : f32 to vector<4x256xf32>
    %42 = arith.select %40, %38, %41 : vector<4x256xi1>, vector<4x256xf32>
    %c0_13 = arith.constant 0 : index
    %c0_14 = arith.constant 0 : index
    %c0_15 = arith.constant 0 : index
    %43 = vector.load %arg2[%c0_13, %c0_14, %c0_15] : memref<9x8x4xf32, #tpu.memory_space<vmem>>, vector<1x8x4xf32>
    %44 = vector.shape_cast %43 : vector<1x8x4xf32> to vector<8x4xf32>
    %cst_16 = arith.constant dense<0.000000e+00> : vector<8x256xf32>
    %45 = tpu.matmul %44, %42, %cst_16 {dimension_numbers = #tpu.dot_dimension_numbers<[1], [0], [0], [1], [0, 0, 1, 1], [], []>} : vector<8x4xf32>, vector<4x256xf32>, vector<8x256xf32> -> vector<8x256xf32>
    %46 = arith.addf %37, %45 : vector<8x256xf32>
    %c1 = arith.constant 1 : index
    %c0_17 = arith.constant 0 : index
    %c0_18 = arith.constant 0 : index
    %47 = vector.load %arg2[%c1, %c0_17, %c0_18] : memref<9x8x4xf32, #tpu.memory_space<vmem>>, vector<1x8x4xf32>
    %48 = vector.shape_cast %47 : vector<1x8x4xf32> to vector<8x4xf32>
    %cst_19 = arith.constant dense<0.000000e+00> : vector<8x256xf32>
    %49 = tpu.matmul %48, %31, %cst_19 {dimension_numbers = #tpu.dot_dimension_numbers<[1], [0], [0], [1], [0, 0, 1, 1], [], []>} : vector<8x4xf32>, vector<4x256xf32>, vector<8x256xf32> -> vector<8x256xf32>
    %50 = arith.addf %46, %49 : vector<8x256xf32>
    %c255_i32 = arith.constant 255 : i32
    %51 = tpu.dynamic_rotate %31 by %c255_i32 dim 1 : vector<4x256xf32>, i32 -> vector<4x256xf32>
    %cst_20 = arith.constant 0.000000e+00 : f32
    %52 = vector.shape_cast %22 : vector<1x256xi1> to vector<1x256xi1>
    %53 = vector.broadcast %52 : vector<1x256xi1> to vector<4x256xi1>
    %54 = vector.broadcast %cst_20 : f32 to vector<4x256xf32>
    %55 = arith.select %53, %51, %54 : vector<4x256xi1>, vector<4x256xf32>
    %c2 = arith.constant 2 : index
    %c0_21 = arith.constant 0 : index
    %c0_22 = arith.constant 0 : index
    %56 = vector.load %arg2[%c2, %c0_21, %c0_22] : memref<9x8x4xf32, #tpu.memory_space<vmem>>, vector<1x8x4xf32>
    %57 = vector.shape_cast %56 : vector<1x8x4xf32> to vector<8x4xf32>
    %cst_23 = arith.constant dense<0.000000e+00> : vector<8x256xf32>
    %58 = tpu.matmul %57, %55, %cst_23 {dimension_numbers = #tpu.dot_dimension_numbers<[1], [0], [0], [1], [0, 0, 1, 1], [], []>} : vector<8x4xf32>, vector<4x256xf32>, vector<8x256xf32> -> vector<8x256xf32>
    %59 = arith.addf %50, %58 : vector<8x256xf32>
    %c1_i32_24 = arith.constant 1 : i32
    %60 = tpu.dynamic_rotate %1 by %c1_i32_24 dim 1 : vector<4x256xf32>, i32 -> vector<4x256xf32>
    %cst_25 = arith.constant 0.000000e+00 : f32
    %61 = vector.shape_cast %20 : vector<1x256xi1> to vector<1x256xi1>
    %62 = vector.broadcast %61 : vector<1x256xi1> to vector<4x256xi1>
    %63 = vector.broadcast %cst_25 : f32 to vector<4x256xf32>
    %64 = arith.select %62, %60, %63 : vector<4x256xi1>, vector<4x256xf32>
    %c3 = arith.constant 3 : index
    %c0_26 = arith.constant 0 : index
    %c0_27 = arith.constant 0 : index
    %65 = vector.load %arg2[%c3, %c0_26, %c0_27] : memref<9x8x4xf32, #tpu.memory_space<vmem>>, vector<1x8x4xf32>
    %66 = vector.shape_cast %65 : vector<1x8x4xf32> to vector<8x4xf32>
    %cst_28 = arith.constant dense<0.000000e+00> : vector<8x256xf32>
    %67 = tpu.matmul %66, %64, %cst_28 {dimension_numbers = #tpu.dot_dimension_numbers<[1], [0], [0], [1], [0, 0, 1, 1], [], []>} : vector<8x4xf32>, vector<4x256xf32>, vector<8x256xf32> -> vector<8x256xf32>
    %68 = arith.addf %59, %67 : vector<8x256xf32>
    %c4 = arith.constant 4 : index
    %c0_29 = arith.constant 0 : index
    %c0_30 = arith.constant 0 : index
    %69 = vector.load %arg2[%c4, %c0_29, %c0_30] : memref<9x8x4xf32, #tpu.memory_space<vmem>>, vector<1x8x4xf32>
    %70 = vector.shape_cast %69 : vector<1x8x4xf32> to vector<8x4xf32>
    %cst_31 = arith.constant dense<0.000000e+00> : vector<8x256xf32>
    %71 = tpu.matmul %70, %1, %cst_31 {dimension_numbers = #tpu.dot_dimension_numbers<[1], [0], [0], [1], [0, 0, 1, 1], [], []>} : vector<8x4xf32>, vector<4x256xf32>, vector<8x256xf32> -> vector<8x256xf32>
    %72 = arith.addf %68, %71 : vector<8x256xf32>
    %c255_i32_32 = arith.constant 255 : i32
    %73 = tpu.dynamic_rotate %1 by %c255_i32_32 dim 1 : vector<4x256xf32>, i32 -> vector<4x256xf32>
    %cst_33 = arith.constant 0.000000e+00 : f32
    %74 = vector.shape_cast %22 : vector<1x256xi1> to vector<1x256xi1>
    %75 = vector.broadcast %74 : vector<1x256xi1> to vector<4x256xi1>
    %76 = vector.broadcast %cst_33 : f32 to vector<4x256xf32>
    %77 = arith.select %75, %73, %76 : vector<4x256xi1>, vector<4x256xf32>
    %c5 = arith.constant 5 : index
    %c0_34 = arith.constant 0 : index
    %c0_35 = arith.constant 0 : index
    %78 = vector.load %arg2[%c5, %c0_34, %c0_35] : memref<9x8x4xf32, #tpu.memory_space<vmem>>, vector<1x8x4xf32>
    %79 = vector.shape_cast %78 : vector<1x8x4xf32> to vector<8x4xf32>
    %cst_36 = arith.constant dense<0.000000e+00> : vector<8x256xf32>
    %80 = tpu.matmul %79, %77, %cst_36 {dimension_numbers = #tpu.dot_dimension_numbers<[1], [0], [0], [1], [0, 0, 1, 1], [], []>} : vector<8x4xf32>, vector<4x256xf32>, vector<8x256xf32> -> vector<8x256xf32>
    %81 = arith.addf %72, %80 : vector<8x256xf32>
    %c1_i32_37 = arith.constant 1 : i32
    %82 = tpu.dynamic_rotate %36 by %c1_i32_37 dim 1 : vector<4x256xf32>, i32 -> vector<4x256xf32>
    %cst_38 = arith.constant 0.000000e+00 : f32
    %83 = vector.shape_cast %20 : vector<1x256xi1> to vector<1x256xi1>
    %84 = vector.broadcast %83 : vector<1x256xi1> to vector<4x256xi1>
    %85 = vector.broadcast %cst_38 : f32 to vector<4x256xf32>
    %86 = arith.select %84, %82, %85 : vector<4x256xi1>, vector<4x256xf32>
    %c6 = arith.constant 6 : index
    %c0_39 = arith.constant 0 : index
    %c0_40 = arith.constant 0 : index
    %87 = vector.load %arg2[%c6, %c0_39, %c0_40] : memref<9x8x4xf32, #tpu.memory_space<vmem>>, vector<1x8x4xf32>
    %88 = vector.shape_cast %87 : vector<1x8x4xf32> to vector<8x4xf32>
    %cst_41 = arith.constant dense<0.000000e+00> : vector<8x256xf32>
    %89 = tpu.matmul %88, %86, %cst_41 {dimension_numbers = #tpu.dot_dimension_numbers<[1], [0], [0], [1], [0, 0, 1, 1], [], []>} : vector<8x4xf32>, vector<4x256xf32>, vector<8x256xf32> -> vector<8x256xf32>
    %90 = arith.addf %81, %89 : vector<8x256xf32>
    %c7 = arith.constant 7 : index
    %c0_42 = arith.constant 0 : index
    %c0_43 = arith.constant 0 : index
    %91 = vector.load %arg2[%c7, %c0_42, %c0_43] : memref<9x8x4xf32, #tpu.memory_space<vmem>>, vector<1x8x4xf32>
    %92 = vector.shape_cast %91 : vector<1x8x4xf32> to vector<8x4xf32>
    %cst_44 = arith.constant dense<0.000000e+00> : vector<8x256xf32>
    %93 = tpu.matmul %92, %36, %cst_44 {dimension_numbers = #tpu.dot_dimension_numbers<[1], [0], [0], [1], [0, 0, 1, 1], [], []>} : vector<8x4xf32>, vector<4x256xf32>, vector<8x256xf32> -> vector<8x256xf32>
    %94 = arith.addf %90, %93 : vector<8x256xf32>
    %c255_i32_45 = arith.constant 255 : i32
    %95 = tpu.dynamic_rotate %36 by %c255_i32_45 dim 1 : vector<4x256xf32>, i32 -> vector<4x256xf32>
    %cst_46 = arith.constant 0.000000e+00 : f32
    %96 = vector.shape_cast %22 : vector<1x256xi1> to vector<1x256xi1>
    %97 = vector.broadcast %96 : vector<1x256xi1> to vector<4x256xi1>
    %98 = vector.broadcast %cst_46 : f32 to vector<4x256xf32>
    %99 = arith.select %97, %95, %98 : vector<4x256xi1>, vector<4x256xf32>
    %c8 = arith.constant 8 : index
    %c0_47 = arith.constant 0 : index
    %c0_48 = arith.constant 0 : index
    %100 = vector.load %arg2[%c8, %c0_47, %c0_48] : memref<9x8x4xf32, #tpu.memory_space<vmem>>, vector<1x8x4xf32>
    %101 = vector.shape_cast %100 : vector<1x8x4xf32> to vector<8x4xf32>
    %cst_49 = arith.constant dense<0.000000e+00> : vector<8x256xf32>
    %102 = tpu.matmul %101, %99, %cst_49 {dimension_numbers = #tpu.dot_dimension_numbers<[1], [0], [0], [1], [0, 0, 1, 1], [], []>} : vector<8x4xf32>, vector<4x256xf32>, vector<8x256xf32> -> vector<8x256xf32>
    %103 = arith.addf %94, %102 : vector<8x256xf32>
    %c0_50 = arith.constant 0 : index
    %c0_51 = arith.constant 0 : index
    %104 = vector.load %arg3[%c0_50, %c0_51] : memref<8x1xf32, #tpu.memory_space<vmem>>, vector<8x1xf32>
    %105 = vector.broadcast %104 : vector<8x1xf32> to vector<8x256xf32>
    %106 = arith.addf %103, %105 : vector<8x256xf32>
    %107 = vector.extract_strided_slice %106 {offsets = [0, 0], sizes = [4, 256], strides = [1, 1]} : vector<8x256xf32> to vector<4x256xf32>
    %c0_52 = arith.constant 0 : index
    %c0_53 = arith.constant 0 : index
    %c0_54 = arith.constant 0 : index
    %108 = vector.load %arg4[%c0_52, %c0_53, %c0_54] : memref<1x4x256xf32, #tpu.memory_space<vmem>>, vector<1x4x256xf32>
    %109 = vector.shape_cast %108 : vector<1x4x256xf32> to vector<4x256xf32>
    %110 = vector.shape_cast %107 : vector<4x256xf32> to vector<1x4x256xf32>
    tpu.vector_store %arg4[%c0_52, %c0_53, %c0_54], %110 {strides = array<i32>} : memref<1x4x256xf32, #tpu.memory_space<vmem>>, vector<1x4x256xf32>,
    %111 = vector.extract_strided_slice %106 {offsets = [4, 0], sizes = [4, 256], strides = [1, 1]} : vector<8x256xf32> to vector<4x256xf32>
    %c0_55 = arith.constant 0 : index
    %c0_56 = arith.constant 0 : index
    %c0_57 = arith.constant 0 : index
    %112 = vector.load %arg5[%c0_55, %c0_56, %c0_57] : memref<1x4x256xf32, #tpu.memory_space<vmem>>, vector<1x4x256xf32>
    %113 = vector.shape_cast %112 : vector<1x4x256xf32> to vector<4x256xf32>
    %114 = vector.shape_cast %111 : vector<4x256xf32> to vector<1x4x256xf32>
    tpu.vector_store %arg5[%c0_55, %c0_56, %c0_57], %114 {strides = array<i32>} : memref<1x4x256xf32, #tpu.memory_space<vmem>>, vector<1x4x256xf32>,
    return
  }
  func.func @transform_0(%arg0: i32) -> (i32, i32, i32) {
    %c0_i32 = arith.constant 0 : i32
    %c0_i32_0 = arith.constant 0 : i32
    %c0_i32_1 = arith.constant 0 : i32
    return %arg0, %c0_i32, %c0_i32_0 : i32, i32, i32
  }
  func.func @transform_1(%arg0: i32) -> (i32, i32, i32) {
    %c0_i32 = arith.constant 0 : i32
    %c0_i32_0 = arith.constant 0 : i32
    %c0_i32_1 = arith.constant 0 : i32
    %c0_i32_2 = arith.constant 0 : i32
    return %c0_i32, %c0_i32_0, %c0_i32_1 : i32, i32, i32
  }
  func.func @transform_2(%arg0: i32) -> (i32, i32) {
    %c0_i32 = arith.constant 0 : i32
    %c0_i32_0 = arith.constant 0 : i32
    %c0_i32_1 = arith.constant 0 : i32
    return %c0_i32, %c0_i32_0 : i32, i32
  }
  func.func @transform_3(%arg0: i32) -> (i32, i32, i32) {
    %c0_i32 = arith.constant 0 : i32
    %c0_i32_0 = arith.constant 0 : i32
    %c0_i32_1 = arith.constant 0 : i32
    return %arg0, %c0_i32, %c0_i32_0 : i32, i32, i32
  }
  func.func @transform_4(%arg0: i32) -> (i32, i32, i32) {
    %c0_i32 = arith.constant 0 : i32
    %c0_i32_0 = arith.constant 0 : i32
    %c0_i32_1 = arith.constant 0 : i32
    return %arg0, %c0_i32, %c0_i32_0 : i32, i32, i32
  }
}

</mosaic_0001>

<llo_original>
// kernel: tpu_custom_call.1
$region0: #{tpu_custom_call.1}
  #allocation0 [shape = 'u32[]', space=smem, size = 0x4, offset = 0x4, fixed_abs, tag = 'smem constant byte address 0x4 - core index']
  #allocation1 [shape = 'u32[144,128]{1,0:T(1,128)}', space=vmem, size = 0x12000, scoped, tag = 'internal scratch']
  %s0 = inlined_call_operand.vmem [shape: f32[2,4,256], index: 0, kind: input, shape index: {}]
  %s1 = inlined_call_operand.vmem [shape: f32[9,8,4], index: 1, kind: input, shape index: {}]
  %s2 = inlined_call_operand.vmem [shape: f32[8,1], index: 2, kind: input, shape index: {}]
  %s3 = inlined_call_operand.hbm [shape: f32[2,4,256], index: 3, kind: output, shape index: {0}]
  %s4 = inlined_call_operand.hbm [shape: f32[2,4,256], index: 4, kind: output, shape index: {1}]
  %5 = xla_tuple %s3, %s4
  %s6 = sld [smem:[#allocation0]]
  $region53: #{tpu_custom_call.1} parent=0
    _
  %s8 = ssub.s32 1, %s6
  %s9 = scalar_select 0, %s8, %s6
  $region1: #{tpu_custom_call.1} parent=0
    #allocation2 [shape = 'u8[8192]{0}', space=vmem, size = 0x2000, scoped, tag = 'output window, operand 0']
    #allocation3 [shape = 's32[2]{0}', space=sflag, size = 0x8, scoped, tag = 'scoped memory for tpu_custom_call.1']
    #allocation4 [shape = 'u8[8192]{0}', space=vmem, size = 0x2000, scoped, tag = 'output window, operand 1']
    #allocation5 [shape = 's32[2]{0}', space=sflag, size = 0x8, scoped, tag = 'scoped memory for tpu_custom_call.1']
    %10 = vsyncpa [#allocation3], 0
    %s11 = scalar_lea.sflag [#allocation3], 1
    %12 = vsyncpa %s11, 0
    %13 = vsyncpa [#allocation5], 0
    %s14 = scalar_lea.sflag [#allocation5], 1
    %15 = vsyncpa %s14, 0
    loop: start=0, step=1, limit=4
    $region2: #{tpu_custom_call.1} parent=1 // loop_pre_header
      _
    $region3: #{tpu_custom_call.1} parent=1 // loop_header
      %s17 = sphi 0, %s21
      %p18 = scmp.ge.s32.totalorder %s17, 4
      %s27 = sphi 0, %s29
      %s30 = sphi 0, %s27
      %s31 = sphi 0, %s30
      %s47 = sphi 0, %s31
      %s51 = sphi 0, %s51
      %s53 = sphi 0, %s51
      %s54 = sphi 0, %s53
      %s68 = sphi 0, %s54
      %s72 = sphi 0, %s72
      %s74 = sphi 0, %s72
      %s75 = sphi 0, %s74
      %s89 = sphi 0, %s75
      %s95 = sphi 0, %s97
      %s98 = sphi 0, %s95
      %s99 = sphi 0, %s98
      %s115 = sphi 0, %s99
      %s121 = sphi 0, %s123
      %s124 = sphi 0, %s121
      %s125 = sphi 0, %s124
      %s141 = sphi 0, %s125
    $region4: #{tpu_custom_call.1} parent=1 // loop_header_branch
      %20 = sbr.rel (%p18) target = $region8
    $region5: #{tpu_custom_call.1} parent=1 // loop_body
      %s22 = ssub.s32 %s17, 1
      %s23 = ssub.s32 %s17, 2
      %s24 = sadd.s32 %s17, 1
      %s25 = ssub.s32 %s17, %s24
      %p26 = scmp.eq.s32.totalorder %s25, 0
      %s28 = sadd.s32 %s27, 1
      %s29 = scalar_select %p26, %s27, %s28
      %p32 = pneg %p26
      %p33 = scmp.eq.s32.totalorder %s17, 1
      %p34 = por %p32, %p33
      %p35 = scmp.ne.s32.totalorder %s27, %s30
      %p36 = scmp.eq.s32.totalorder %s17, 0
      %p37 = por %p35, %p36
      %p38 = scmp.ne.s32.totalorder %s27, %s30
      %p39 = scmp.eq.s32.totalorder %s22, 1
      %p40 = por %p38, %p39
      %p41 = scmp.ne.s32.totalorder %s30, %s31
      %p42 = scmp.eq.s32.totalorder %s22, 0
      %p43 = por %p41, %p42
      %p44 = scmp.ne.s32.totalorder %s30, %s31
      %p45 = scmp.eq.s32.totalorder %s23, 1
      %p46 = por %p44, %p45
      %p48 = scmp.ne.s32.totalorder %s31, %s47
      %p49 = scmp.eq.s32.totalorder %s23, 0
      %p50 = por %p48, %p49
      %s52 = sadd.s32 %s51, 1
      %p55 = scmp.eq.s32.totalorder %s17, 1
      %p56 = scmp.ne.s32.totalorder %s51, %s53
      %p57 = scmp.eq.s32.totalorder %s17, 0
      %p58 = por %p56, %p57
      %p59 = scmp.ne.s32.totalorder %s51, %s53
      %p60 = scmp.eq.s32.totalorder %s22, 1
      %p61 = por %p59, %p60
      %p62 = scmp.ne.s32.totalorder %s53, %s54
      %p63 = scmp.eq.s32.totalorder %s22, 0
      %p64 = por %p62, %p63
      %p65 = scmp.ne.s32.totalorder %s53, %s54
      %p66 = scmp.eq.s32.totalorder %s23, 1
      %p67 = por %p65, %p66
      %p69 = scmp.ne.s32.totalorder %s54, %s68
      %p70 = scmp.eq.s32.totalorder %s23, 0
      %p71 = por %p69, %p70
      %s73 = sadd.s32 %s72, 1
      %p76 = scmp.eq.s32.totalorder %s17, 1
      %p77 = scmp.ne.s32.totalorder %s72, %s74
      %p78 = scmp.eq.s32.totalorder %s17, 0
      %p79 = por %p77, %p78
      %p80 = scmp.ne.s32.totalorder %s72, %s74
      %p81 = scmp.eq.s32.totalorder %s22, 1
      %p82 = por %p80, %p81
      %p83 = scmp.ne.s32.totalorder %s74, %s75
      %p84 = scmp.eq.s32.totalorder %s22, 0
      %p85 = por %p83, %p84
      %p86 = scmp.ne.s32.totalorder %s74, %s75
      %p87 = scmp.eq.s32.totalorder %s23, 1
      %p88 = por %p86, %p87
      %p90 = scmp.ne.s32.totalorder %s75, %s89
      %p91 = scmp.eq.s32.totalorder %s23, 0
      %p92 = por %p90, %p91
      %s93 = ssub.s32 %s17, %s24
      %p94 = scmp.eq.s32.totalorder %s93, 0
      %s96 = sadd.s32 %s95, 1
      %s97 = scalar_select %p94, %s95, %s96
      %p100 = pneg %p94
      %p101 = scmp.eq.s32.totalorder %s17, 1
      %p102 = por %p100, %p101
      %p103 = scmp.ne.s32.totalorder %s95, %s98
      %p104 = scmp.eq.s32.totalorder %s17, 0
      %p105 = por %p103, %p104
      %p106 = scmp.ne.s32.totalorder %s95, %s98
      %p107 = scmp.eq.s32.totalorder %s22, 1
      %p108 = por %p106, %p107
      %p109 = scmp.ne.s32.totalorder %s98, %s99
      %p110 = scmp.eq.s32.totalorder %s22, 0
      %p111 = por %p109, %p110
      %p112 = scmp.ne.s32.totalorder %s98, %s99
      %p113 = scmp.eq.s32.totalorder %s23, 1
      %p114 = por %p112, %p113
      %p116 = scmp.ne.s32.totalorder %s99, %s115
      %p117 = scmp.eq.s32.totalorder %s23, 0
      %p118 = por %p116, %p117
      %s119 = ssub.s32 %s17, %s24
      %p120 = scmp.eq.s32.totalorder %s119, 0
      %s122 = sadd.s32 %s121, 1
      %s123 = scalar_select %p120, %s121, %s122
      %p126 = pneg %p120
      %p127 = scmp.eq.s32.totalorder %s17, 1
      %p128 = por %p126, %p127
      %p129 = scmp.ne.s32.totalorder %s121, %s124
      %p130 = scmp.eq.s32.totalorder %s17, 0
      %p131 = por %p129, %p130
      %p132 = scmp.ne.s32.totalorder %s121, %s124
      %p133 = scmp.eq.s32.totalorder %s22, 1
      %p134 = por %p132, %p133
      %p135 = scmp.ne.s32.totalorder %s124, %s125
      %p136 = scmp.eq.s32.totalorder %s22, 0
      %p137 = por %p135, %p136
      %p138 = scmp.ne.s32.totalorder %s124, %s125
      %p139 = scmp.eq.s32.totalorder %s23, 1
      %p140 = por %p138, %p139
      %p142 = scmp.ne.s32.totalorder %s125, %s141
      %p143 = scmp.eq.s32.totalorder %s23, 0
      %p144 = por %p142, %p143
      %p145 = scmp.le.s32.totalorder 1, %s17
      %p146 = scmp.lt.s32.totalorder %s17, 3
      %p147 = pnand %p145, %p146
      %p148 = pneg %p147
      // Predicated region
      $region9: #{tpu_custom_call.1} parent=5 // pred_check
        _
      $region10: #{tpu_custom_call.1} parent=5 // pred_check_branch
        %150 = sbr.rel (%p147) target = $region12
      $region11: #{tpu_custom_call.1} parent=5 // pred_region
        %s151 = ssub.s32 %s17, 1
        // Predicated region
        $region13: #{tpu_custom_call.1} parent=11 // pred_check
          %p152 = pneg %p64
        $region14: #{tpu_custom_call.1} parent=11 // pred_check_branch
          %154 = sbr.rel (%p152) target = $region16
        $region15: #{tpu_custom_call.1} parent=11 // pred_region
          _
        $region16: #{tpu_custom_call.1} parent=11 // pred_fallthru
          _
        // Predicated region
        $region17: #{tpu_custom_call.1} parent=11 // pred_check
          %p155 = pneg %p85
        $region18: #{tpu_custom_call.1} parent=11 // pred_check_branch
          %157 = sbr.rel (%p155) target = $region20
        $region19: #{tpu_custom_call.1} parent=11 // pred_region
          _
        $region20: #{tpu_custom_call.1} parent=11 // pred_fallthru
          _
      $region12: #{tpu_custom_call.1} parent=5 // pred_fallthru
        _
      %p158 = scmp.lt.s32.totalorder %s17, 2
      // Predicated region
      $region21: #{tpu_custom_call.1} parent=5 // pred_check
        %p159 = pneg %p158
      $region22: #{tpu_custom_call.1} parent=5 // pred_check_branch
        %161 = sbr.rel (%p159) target = $region24
      $region23: #{tpu_custom_call.1} parent=5 // pred_region
        // Predicated region
        $region25: #{tpu_custom_call.1} parent=23 // pred_check
          %p162 = pneg %p37
        $region26: #{tpu_custom_call.1} parent=23 // pred_check_branch
          %164 = sbr.rel (%p162) target = $region28
        $region27: #{tpu_custom_call.1} parent=23 // pred_region
          %p165 = scmp.lt.s32.totalorder %s17, 1
          %s166 = scalar_select %p165, %s17, 1
          %s167 = smul.addr %s166, 2
          %s168 = smul.addr %s167, 4
          %s169 = scalar_lea.vmem %s0, %s168
        $region28: #{tpu_custom_call.1} parent=23 // pred_fallthru
          _
      $region24: #{tpu_custom_call.1} parent=5 // pred_fallthru
        _
      %p170 = scmp.le.s32.totalorder 1, %s17
      %p171 = scmp.lt.s32.totalorder %s17, 3
      %p172 = pnand %p170, %p171
      %p173 = pneg %p172
      // Predicated region
      $region29: #{tpu_custom_call.1} parent=5 // pred_check
        _
      $region30: #{tpu_custom_call.1} parent=5 // pred_check_branch
        %175 = sbr.rel (%p172) target = $region32
      $region31: #{tpu_custom_call.1} parent=5 // pred_region
        %s176 = ssub.s32 %s17, 1
        %p177 = scmp.lt.s32.totalorder %s22, 1
        %s178 = scalar_select %p177, %s22, 1
        %s179 = smul.addr %s178, 2
        %s180 = smul.addr %s179, 4
        %s181 = scalar_lea.vmem %s0, %s180
        %p182 = pneg %p43
        %p183 = pneg %p40
        %p184 = pneg %p64
        %p185 = pneg %p61
        %p186 = pneg %p85
        %p187 = pneg %p82
        %p188 = pneg %p111
        %p189 = pneg %p108
        %s190 = sand.u32 %s98, 1
        %s191 = scalar_lea.sflag [#allocation3], %s190
        %s192 = sand.u32 %s98, 1
        %s193 = smul.addr %s192, 8
        %s194 = scalar_lea.vmem [#allocation2], %s193
        %p195 = pneg %p137
        %p196 = pneg %p134
        %s197 = sand.u32 %s124, 1
        %s198 = scalar_lea.sflag [#allocation5], %s197
        %s199 = sand.u32 %s124, 1
        %s200 = smul.addr %s199, 8
        %s201 = scalar_lea.vmem [#allocation4], %s200
        %p202 = scmp.lt.s32.totalorder %s22, 1
        %s203 = scalar_select %p202, %s22, 1
        %s204 = smul.addr %s203, 2
        %s205 = smul.addr %s204, 4
        %s206 = scalar_lea.vmem %s0, %s205
        %v207 = vld [vmem:[%s206] sm:$0xff]
        %v208 = vlaneseq
        %v209 = vand.u32 %v208, 127
        %v210 = vadd.s32 %v209, 128
        %vm211 = vcmp.lt.s32.totalorder %v209, 0
        %v212 = vsub.s32 0, %v209
        %v213 = vsel %vm211, %v212, %v209
        %v214 = vshrl.u32 %v213, 4
        %v215 = vand.u32 %v213, 15
        %v216 = vsub.s32 0, %v215
        %v217 = vsel %vm211, %v216, %v215
        %vm218 = vcmp.lt.s32.totalorder %v210, 0
        %v219 = vsub.s32 0, %v210
        %v220 = vsel %vm218, %v219, %v210
        %v221 = vshrl.u32 %v220, 4
        %v222 = vand.u32 %v220, 15
        %v223 = vsub.s32 0, %v222
        %v224 = vsel %vm218, %v223, %v222
        %vm225 = vcmp.ne.s32.totalorder %v217, 0
        %vm226 = vcmp.ne.s32.totalorder %v224, 0
        %vm227 = vcmp.lt.s32.totalorder %v217, 0
        %vm228 = vcmp.lt.s32.totalorder %v224, 0
        %vm229 = vmand %vm227, %vm225
        %vm230 = vmand %vm228, %vm226
        %v231 = vadd.s32 %v217, 16
        %v232 = vadd.s32 %v224, 16
        %v233 = vsel %vm229, %v231, %v217
        %v234 = vsel %vm230, %v232, %v224
        %vm235 = vcmp.ne.s32.totalorder %v233, 0
        %vm236 = vcmp.ne.s32.totalorder %v234, 0
        %vm237 = vcmp.ne.s32.totalorder %v233, 15
        %vm238 = vcmp.ne.s32.totalorder %v234, 15
        %vm239 = vcmp.ge.s32.totalorder %v209, 16
        %vm240 = vcmp.ge.s32.totalorder %v210, 16
        %vm241 = vcmp.lt.s32.totalorder %v209, 240
        %vm242 = vcmp.lt.s32.totalorder %v210, 240
        %v244 = vcombine.high %v207, %v207
        %246 = vrot.lane.b32.xlu0 %v207, 16
        %v247 = vpop.permute.xlu0 %246
        %248 = vrot.lane.b32.xlu0 %v244, 16
        %v249 = vpop.permute.xlu0 %248
        %vm250 = vcmp.lt.s32.totalorder %v209, 16
        %v251 = vsel %vm250, %v247, %v249
        %v252 = vsel %vm250, %v249, %v247
        %v253 = vsel %vm239, 1, 0
        %v254 = vsel %vm240, 1, 0
        %vm255 = vcmp.eq.s32.totalorder %v253, 1
        %vm256 = vcmp.eq.s32.totalorder %v254, 1
        %v257 = vsel %vm255, %v252, 0.0
        %v258 = vsel %vm256, %v251, 0.0
        %259 = vrot.lane.b32.xlu0 %v207, 112
        %v260 = vpop.permute.xlu0 %259
        %261 = vrot.lane.b32.xlu0 %v244, 112
        %v262 = vpop.permute.xlu0 %261
        %vm263 = vcmp.lt.s32.totalorder %v209, 112
        %v264 = vsel %vm263, %v260, %v262
        %v265 = vsel %vm263, %v262, %v260
        %v266 = vsel %vm241, 1, 0
        %v267 = vsel %vm242, 1, 0
        %vm268 = vcmp.eq.s32.totalorder %v266, 1
        %vm269 = vcmp.eq.s32.totalorder %v267, 1
        %v270 = vsel %vm268, %v264, 0.0
        %v271 = vsel %vm269, %v265, 0.0
        %272 = vrot.lane.b32.xlu0 %v257, 1
        %v273 = vpop.permute.xlu0 %272
        %274 = vrot.lane.b32.xlu0 %v258, 1
        %v275 = vpop.permute.xlu0 %274
        %vm276 = vcmp.lt.s32.totalorder %v209, 1
        %v277 = vsel %vm276, %v273, %v275
        %v278 = vsel %vm276, %v275, %v273
        %v279 = vsel %vm235, 1, 0
        %v280 = vsel %vm236, 1, 0
        %vm281 = vcmp.eq.s32.totalorder %v279, 1
        %vm282 = vcmp.eq.s32.totalorder %v280, 1
        %v283 = vsel %vm281, %v278, 0.0
        %v284 = vsel %vm282, %v277, 0.0
        %v285 = vld [vmem:[%s1] sm:$0xff]
        %s286 = scalar_lea.vmem %s1, 8
        %v287 = vld [vmem:[%s286] sm:$0xff]
        %vm288 = vcmask 31744
        %v290 = vsel %vm288, %v287, 0
        %vm292 = vcmask 1043456
        %v294 = vsel %vm292, %v257, 0
        %v297 = vsel %vm292, %v258, 0
        %299 = vmatprep.subr.mxu0 %v297
        %300 = vmatpush1.msra.mxu0 %v294
        %301 = vmatprep.subr.mxu0 0.0
        %302 = vmatpush1.msra.mxu0 0.0
        %303 = vmatprep.subr.mxu0 0.0
        %304 = vmatpush1.msra.mxu0 0.0
        %305 = vmatprep.subr.mxu0 0.0
        %306 = vmatpush1.msra.mxu0 0.0
        %307 = vmatprep.subr.mxu0 0.0
        %308 = vmatpush1.msra.mxu0 0.0
        %309 = vmatprep.subr.mxu0 0.0
        %310 = vmatpush1.msra.mxu0 0.0
        %311 = vmatprep.subr.mxu0 0.0
        %312 = vmatpush1.msra.mxu0 0.0
        %313 = vmatprep.subr.mxu0 0.0
        %314 = vmatpush1.msra.mxu0 0.0
        %315 = vmatprep.subr.mxu0 0.0
        %316 = vmatpush1.msra.mxu0 0.0
        %317 = vmatprep.subr.mxu0 0.0
        %318 = vmatpush1.msra.mxu0 0.0
        %319 = vmatprep.subr.mxu0 0.0
        %320 = vmatpush1.msra.mxu0 0.0
        %321 = vmatprep.subr.mxu0 0.0
        %322 = vmatpush1.msra.mxu0 0.0
        %323 = vmatprep.subr.mxu0 0.0
        %324 = vmatpush1.msra.mxu0 0.0
        %325 = vmatprep.subr.mxu0 0.0
        %326 = vmatpush1.msra.mxu0 0.0
        %327 = vmatprep.subr.mxu0 0.0
        %328 = vmatpush1.msra.mxu0 0.0
        %329 = vmatprep.subr.mxu0 0.0
        %330 = vmatpush1.msra.mxu0 0.0
        %331 = vmatprep.subr.mxu0 0.0
        %332 = vmatpush1.msra.mxu0 0.0
        %333 = vmatprep.subr.mxu0 0.0
        %334 = vmatpush1.msra.mxu0 0.0
        %335 = vmatprep.subr.mxu0 0.0
        %336 = vmatpush1.msra.mxu0 0.0
        %337 = vmatprep.subr.mxu0 0.0
        %338 = vmatpush1.msra.mxu0 0.0
        %339 = vmatprep.subr.mxu0 0.0
        %340 = vmatpush1.msra.mxu0 0.0
        %341 = vmatprep.subr.mxu0 0.0
        %342 = vmatpush1.msra.mxu0 0.0
        %343 = vmatprep.subr.mxu0 0.0
        %344 = vmatpush1.msra.mxu0 0.0
        %345 = vmatprep.subr.mxu0 0.0
        %346 = vmatpush1.msra.mxu0 0.0
        %347 = vmatprep.subr.mxu0 0.0
        %348 = vmatpush1.msra.mxu0 0.0
        %349 = vmatprep.subr.mxu0 0.0
        %350 = vmatpush1.msra.mxu0 0.0
        %351 = vmatprep.subr.mxu0 0.0
        %352 = vmatpush1.msra.mxu0 0.0
        %353 = vmatprep.subr.mxu0 0.0
        %354 = vmatpush1.msra.mxu0 0.0
        %355 = vmatprep.subr.mxu0 0.0
        %356 = vmatpush1.msra.mxu0 0.0
        %357 = vmatprep.subr.mxu0 0.0
        %358 = vmatpush1.msra.mxu0 0.0
        %359 = vmatprep.subr.mxu0 0.0
        %360 = vmatpush1.msra.mxu0 0.0
        %361 = vmatprep.subr.mxu0 0.0
        %362 = vmatpush1.msra.mxu0 0.0
        %363 = vmatprep.mubr.f32.mxu0 0.0
        %364 = vmatmul.mubr.f32.gmra.mrb[0].mxu0 %v290
        %v365 = vpop.f32.mrb[0].mxu0
        %v366 = vadd.f32 0.0, %v365
        %v367 = vpop.f32.mrb[0].mxu0
        %v368 = vadd.f32 0.0, %v367
        %369 = vdwg.mxu0
        %v371 = vsel %vm288, %v285, 0
        %v374 = vsel %vm292, %v283, 0
        %v377 = vsel %vm292, %v284, 0
        %379 = vmatprep.subr.mxu0 %v377
        %380 = vmatpush1.msra.mxu0 %v374
        %381 = vmatprep.subr.mxu0 0.0
        %382 = vmatpush1.msra.mxu0 0.0
        %383 = vmatprep.subr.mxu0 0.0
        %384 = vmatpush1.msra.mxu0 0.0
        %385 = vmatprep.subr.mxu0 0.0
        %386 = vmatpush1.msra.mxu0 0.0
        %387 = vmatprep.subr.mxu0 0.0
        %388 = vmatpush1.msra.mxu0 0.0
        %389 = vmatprep.subr.mxu0 0.0
        %390 = vmatpush1.msra.mxu0 0.0
        %391 = vmatprep.subr.mxu0 0.0
        %392 = vmatpush1.msra.mxu0 0.0
        %393 = vmatprep.subr.mxu0 0.0
        %394 = vmatpush1.msra.mxu0 0.0
        %395 = vmatprep.subr.mxu0 0.0
        %396 = vmatpush1.msra.mxu0 0.0
        %397 = vmatprep.subr.mxu0 0.0
        %398 = vmatpush1.msra.mxu0 0.0
        %399 = vmatprep.subr.mxu0 0.0
        %400 = vmatpush1.msra.mxu0 0.0
        %401 = vmatprep.subr.mxu0 0.0
        %402 = vmatpush1.msra.mxu0 0.0
        %403 = vmatprep.subr.mxu0 0.0
        %404 = vmatpush1.msra.mxu0 0.0
        %405 = vmatprep.subr.mxu0 0.0
        %406 = vmatpush1.msra.mxu0 0.0
        %407 = vmatprep.subr.mxu0 0.0
        %408 = vmatpush1.msra.mxu0 0.0
        %409 = vmatprep.subr.mxu0 0.0
        %410 = vmatpush1.msra.mxu0 0.0
        %411 = vmatprep.subr.mxu0 0.0
        %412 = vmatpush1.msra.mxu0 0.0
        %413 = vmatprep.subr.mxu0 0.0
        %414 = vmatpush1.msra.mxu0 0.0
        %415 = vmatprep.subr.mxu0 0.0
        %416 = vmatpush1.msra.mxu0 0.0
        %417 = vmatprep.subr.mxu0 0.0
        %418 = vmatpush1.msra.mxu0 0.0
        %419 = vmatprep.subr.mxu0 0.0
        %420 = vmatpush1.msra.mxu0 0.0
        %421 = vmatprep.subr.mxu0 0.0
        %422 = vmatpush1.msra.mxu0 0.0
        %423 = vmatprep.subr.mxu0 0.0
        %424 = vmatpush1.msra.mxu0 0.0
        %425 = vmatprep.subr.mxu0 0.0
        %426 = vmatpush1.msra.mxu0 0.0
        %427 = vmatprep.subr.mxu0 0.0
        %428 = vmatpush1.msra.mxu0 0.0
        %429 = vmatprep.subr.mxu0 0.0
        %430 = vmatpush1.msra.mxu0 0.0
        %431 = vmatprep.subr.mxu0 0.0
        %432 = vmatpush1.msra.mxu0 0.0
        %433 = vmatprep.subr.mxu0 0.0
        %434 = vmatpush1.msra.mxu0 0.0
        %435 = vmatprep.subr.mxu0 0.0
        %436 = vmatpush1.msra.mxu0 0.0
        %437 = vmatprep.subr.mxu0 0.0
        %438 = vmatpush1.msra.mxu0 0.0
        %439 = vmatprep.subr.mxu0 0.0
        %440 = vmatpush1.msra.mxu0 0.0
        %441 = vmatprep.subr.mxu0 0.0
        %442 = vmatpush1.msra.mxu0 0.0
        %443 = vmatprep.mubr.f32.mxu0 0.0
        %444 = vmatmul.mubr.f32.gmra.mrb[0].mxu0 %v371
        %v445 = vpop.f32.mrb[0].mxu0
        %v446 = vadd.f32 %v366, %v445
        %v447 = vpop.f32.mrb[0].mxu0
        %v448 = vadd.f32 %v368, %v447
        %449 = vdwg.mxu0
        %450 = vrot.lane.b32.xlu0 %v257, 127
        %v451 = vpop.permute.xlu0 %450
        %452 = vrot.lane.b32.xlu0 %v258, 127
        %v453 = vpop.permute.xlu0 %452
        %vm454 = vcmp.lt.s32.totalorder %v209, 127
        %v455 = vsel %vm454, %v451, %v453
        %v456 = vsel %vm454, %v453, %v451
        %v457 = vsel %vm237, 1, 0
        %v458 = vsel %vm238, 1, 0
        %vm459 = vcmp.eq.s32.totalorder %v457, 1
        %vm460 = vcmp.eq.s32.totalorder %v458, 1
        %v461 = vsel %vm459, %v455, 0.0
        %v462 = vsel %vm460, %v456, 0.0
        %s463 = scalar_lea.vmem %s1, 16
        %v464 = vld [vmem:[%s463] sm:$0xff]
        %v466 = vsel %vm288, %v464, 0
        %v469 = vsel %vm292, %v461, 0
        %v472 = vsel %vm292, %v462, 0
        %474 = vmatprep.subr.mxu0 %v472
        %475 = vmatpush1.msra.mxu0 %v469
        %476 = vmatprep.subr.mxu0 0.0
        %477 = vmatpush1.msra.mxu0 0.0
        %478 = vmatprep.subr.mxu0 0.0
        %479 = vmatpush1.msra.mxu0 0.0
        %480 = vmatprep.subr.mxu0 0.0
        %481 = vmatpush1.msra.mxu0 0.0
        %482 = vmatprep.subr.mxu0 0.0
        %483 = vmatpush1.msra.mxu0 0.0
        %484 = vmatprep.subr.mxu0 0.0
        %485 = vmatpush1.msra.mxu0 0.0
        %486 = vmatprep.subr.mxu0 0.0
        %487 = vmatpush1.msra.mxu0 0.0
        %488 = vmatprep.subr.mxu0 0.0
        %489 = vmatpush1.msra.mxu0 0.0
        %490 = vmatprep.subr.mxu0 0.0
        %491 = vmatpush1.msra.mxu0 0.0
        %492 = vmatprep.subr.mxu0 0.0
        %493 = vmatpush1.msra.mxu0 0.0
        %494 = vmatprep.subr.mxu0 0.0
        %495 = vmatpush1.msra.mxu0 0.0
        %496 = vmatprep.subr.mxu0 0.0
        %497 = vmatpush1.msra.mxu0 0.0
        %498 = vmatprep.subr.mxu0 0.0
        %499 = vmatpush1.msra.mxu0 0.0
        %500 = vmatprep.subr.mxu0 0.0
        %501 = vmatpush1.msra.mxu0 0.0
        %502 = vmatprep.subr.mxu0 0.0
        %503 = vmatpush1.msra.mxu0 0.0
        %504 = vmatprep.subr.mxu0 0.0
        %505 = vmatpush1.msra.mxu0 0.0
        %506 = vmatprep.subr.mxu0 0.0
        %507 = vmatpush1.msra.mxu0 0.0
        %508 = vmatprep.subr.mxu0 0.0
        %509 = vmatpush1.msra.mxu0 0.0
        %510 = vmatprep.subr.mxu0 0.0
        %511 = vmatpush1.msra.mxu0 0.0
        %512 = vmatprep.subr.mxu0 0.0
        %513 = vmatpush1.msra.mxu0 0.0
        %514 = vmatprep.subr.mxu0 0.0
        %515 = vmatpush1.msra.mxu0 0.0
        %516 = vmatprep.subr.mxu0 0.0
        %517 = vmatpush1.msra.mxu0 0.0
        %518 = vmatprep.subr.mxu0 0.0
        %519 = vmatpush1.msra.mxu0 0.0
        %520 = vmatprep.subr.mxu0 0.0
        %521 = vmatpush1.msra.mxu0 0.0
        %522 = vmatprep.subr.mxu0 0.0
        %523 = vmatpush1.msra.mxu0 0.0
        %524 = vmatprep.subr.mxu0 0.0
        %525 = vmatpush1.msra.mxu0 0.0
        %526 = vmatprep.subr.mxu0 0.0
        %527 = vmatpush1.msra.mxu0 0.0
        %528 = vmatprep.subr.mxu0 0.0
        %529 = vmatpush1.msra.mxu0 0.0
        %530 = vmatprep.subr.mxu0 0.0
        %531 = vmatpush1.msra.mxu0 0.0
        %532 = vmatprep.subr.mxu0 0.0
        %533 = vmatpush1.msra.mxu0 0.0
        %534 = vmatprep.subr.mxu0 0.0
        %535 = vmatpush1.msra.mxu0 0.0
        %536 = vmatprep.subr.mxu0 0.0
        %537 = vmatpush1.msra.mxu0 0.0
        %538 = vmatprep.mubr.f32.mxu0 0.0
        %539 = vmatmul.mubr.f32.gmra.mrb[0].mxu0 %v466
        %v540 = vpop.f32.mrb[0].mxu0
        %v541 = vadd.f32 0.0, %v540
        %v542 = vpop.f32.mrb[0].mxu0
        %v543 = vadd.f32 0.0, %v542
        %544 = vdwg.mxu0
        %v545 = vadd.f32 %v446, %v541
        %v546 = vadd.f32 %v448, %v543
        %547 = vrot.lane.b32.xlu0 %v207, 1
        %v548 = vpop.permute.xlu0 %547
        %549 = vrot.lane.b32.xlu0 %v244, 1
        %v550 = vpop.permute.xlu0 %549
        %v551 = vsel %vm276, %v548, %v550
        %v552 = vsel %vm276, %v550, %v548
        %v553 = vsel %vm281, %v552, 0.0
        %v554 = vsel %vm282, %v551, 0.0
        %s555 = scalar_lea.vmem %s1, 24
        %v556 = vld [vmem:[%s555] sm:$0xff]
        %v558 = vsel %vm288, %v556, 0
        %v561 = vsel %vm292, %v553, 0
        %v564 = vsel %vm292, %v554, 0
        %566 = vmatprep.subr.mxu0 %v564
        %567 = vmatpush1.msra.mxu0 %v561
        %568 = vmatprep.subr.mxu0 0.0
        %569 = vmatpush1.msra.mxu0 0.0
        %570 = vmatprep.subr.mxu0 0.0
        %571 = vmatpush1.msra.mxu0 0.0
        %572 = vmatprep.subr.mxu0 0.0
        %573 = vmatpush1.msra.mxu0 0.0
        %574 = vmatprep.subr.mxu0 0.0
        %575 = vmatpush1.msra.mxu0 0.0
        %576 = vmatprep.subr.mxu0 0.0
        %577 = vmatpush1.msra.mxu0 0.0
        %578 = vmatprep.subr.mxu0 0.0
        %579 = vmatpush1.msra.mxu0 0.0
        %580 = vmatprep.subr.mxu0 0.0
        %581 = vmatpush1.msra.mxu0 0.0
        %582 = vmatprep.subr.mxu0 0.0
        %583 = vmatpush1.msra.mxu0 0.0
        %584 = vmatprep.subr.mxu0 0.0
        %585 = vmatpush1.msra.mxu0 0.0
        %586 = vmatprep.subr.mxu0 0.0
        %587 = vmatpush1.msra.mxu0 0.0
        %588 = vmatprep.subr.mxu0 0.0
        %589 = vmatpush1.msra.mxu0 0.0
        %590 = vmatprep.subr.mxu0 0.0
        %591 = vmatpush1.msra.mxu0 0.0
        %592 = vmatprep.subr.mxu0 0.0
        %593 = vmatpush1.msra.mxu0 0.0
        %594 = vmatprep.subr.mxu0 0.0
        %595 = vmatpush1.msra.mxu0 0.0
        %596 = vmatprep.subr.mxu0 0.0
        %597 = vmatpush1.msra.mxu0 0.0
        %598 = vmatprep.subr.mxu0 0.0
        %599 = vmatpush1.msra.mxu0 0.0
        %600 = vmatprep.subr.mxu0 0.0
        %601 = vmatpush1.msra.mxu0 0.0
        %602 = vmatprep.subr.mxu0 0.0
        %603 = vmatpush1.msra.mxu0 0.0
        %604 = vmatprep.subr.mxu0 0.0
        %605 = vmatpush1.msra.mxu0 0.0
        %606 = vmatprep.subr.mxu0 0.0
        %607 = vmatpush1.msra.mxu0 0.0
        %608 = vmatprep.subr.mxu0 0.0
        %609 = vmatpush1.msra.mxu0 0.0
        %610 = vmatprep.subr.mxu0 0.0
        %611 = vmatpush1.msra.mxu0 0.0
        %612 = vmatprep.subr.mxu0 0.0
        %613 = vmatpush1.msra.mxu0 0.0
        %614 = vmatprep.subr.mxu0 0.0
        %615 = vmatpush1.msra.mxu0 0.0
        %616 = vmatprep.subr.mxu0 0.0
        %617 = vmatpush1.msra.mxu0 0.0
        %618 = vmatprep.subr.mxu0 0.0
        %619 = vmatpush1.msra.mxu0 0.0
        %620 = vmatprep.subr.mxu0 0.0
        %621 = vmatpush1.msra.mxu0 0.0
        %622 = vmatprep.subr.mxu0 0.0
        %623 = vmatpush1.msra.mxu0 0.0
        %624 = vmatprep.subr.mxu0 0.0
        %625 = vmatpush1.msra.mxu0 0.0
        %626 = vmatprep.subr.mxu0 0.0
        %627 = vmatpush1.msra.mxu0 0.0
        %628 = vmatprep.subr.mxu0 0.0
        %629 = vmatpush1.msra.mxu0 0.0
        %630 = vmatprep.mubr.f32.mxu0 0.0
        %631 = vmatmul.mubr.f32.gmra.mrb[0].mxu0 %v558
        %v632 = vpop.f32.mrb[0].mxu0
        %v633 = vadd.f32 0.0, %v632
        %v634 = vpop.f32.mrb[0].mxu0
        %v635 = vadd.f32 0.0, %v634
        %636 = vdwg.mxu0
        %v637 = vadd.f32 %v545, %v633
        %v638 = vadd.f32 %v546, %v635
        %s639 = scalar_lea.vmem %s1, 32
        %v640 = vld [vmem:[%s639] sm:$0xff]
        %v642 = vsel %vm288, %v640, 0
        %v644 = vsel %vm292, %v207, 0
        %v646 = vsel %vm292, %v244, 0
        %648 = vmatprep.subr.mxu0 %v646
        %649 = vmatpush1.msra.mxu0 %v644
        %650 = vmatprep.subr.mxu0 0.0
        %651 = vmatpush1.msra.mxu0 0.0
        %652 = vmatprep.subr.mxu0 0.0
        %653 = vmatpush1.msra.mxu0 0.0
        %654 = vmatprep.subr.mxu0 0.0
        %655 = vmatpush1.msra.mxu0 0.0
        %656 = vmatprep.subr.mxu0 0.0
        %657 = vmatpush1.msra.mxu0 0.0
        %658 = vmatprep.subr.mxu0 0.0
        %659 = vmatpush1.msra.mxu0 0.0
        %660 = vmatprep.subr.mxu0 0.0
        %661 = vmatpush1.msra.mxu0 0.0
        %662 = vmatprep.subr.mxu0 0.0
        %663 = vmatpush1.msra.mxu0 0.0
        %664 = vmatprep.subr.mxu0 0.0
        %665 = vmatpush1.msra.mxu0 0.0
        %666 = vmatprep.subr.mxu0 0.0
        %667 = vmatpush1.msra.mxu0 0.0
        %668 = vmatprep.subr.mxu0 0.0
        %669 = vmatpush1.msra.mxu0 0.0
        %670 = vmatprep.subr.mxu0 0.0
        %671 = vmatpush1.msra.mxu0 0.0
        %672 = vmatprep.subr.mxu0 0.0
        %673 = vmatpush1.msra.mxu0 0.0
        %674 = vmatprep.subr.mxu0 0.0
        %675 = vmatpush1.msra.mxu0 0.0
        %676 = vmatprep.subr.mxu0 0.0
        %677 = vmatpush1.msra.mxu0 0.0
        %678 = vmatprep.subr.mxu0 0.0
        %679 = vmatpush1.msra.mxu0 0.0
        %680 = vmatprep.subr.mxu0 0.0
        %681 = vmatpush1.msra.mxu0 0.0
        %682 = vmatprep.subr.mxu0 0.0
        %683 = vmatpush1.msra.mxu0 0.0
        %684 = vmatprep.subr.mxu0 0.0
        %685 = vmatpush1.msra.mxu0 0.0
        %686 = vmatprep.subr.mxu0 0.0
        %687 = vmatpush1.msra.mxu0 0.0
        %688 = vmatprep.subr.mxu0 0.0
        %689 = vmatpush1.msra.mxu0 0.0
        %690 = vmatprep.subr.mxu0 0.0
        %691 = vmatpush1.msra.mxu0 0.0
        %692 = vmatprep.subr.mxu0 0.0
        %693 = vmatpush1.msra.mxu0 0.0
        %694 = vmatprep.subr.mxu0 0.0
        %695 = vmatpush1.msra.mxu0 0.0
        %696 = vmatprep.subr.mxu0 0.0
        %697 = vmatpush1.msra.mxu0 0.0
        %698 = vmatprep.subr.mxu0 0.0
        %699 = vmatpush1.msra.mxu0 0.0
        %700 = vmatprep.subr.mxu0 0.0
        %701 = vmatpush1.msra.mxu0 0.0
        %702 = vmatprep.subr.mxu0 0.0
        %703 = vmatpush1.msra.mxu0 0.0
        %704 = vmatprep.subr.mxu0 0.0
        %705 = vmatpush1.msra.mxu0 0.0
        %706 = vmatprep.subr.mxu0 0.0
        %707 = vmatpush1.msra.mxu0 0.0
        %708 = vmatprep.subr.mxu0 0.0
        %709 = vmatpush1.msra.mxu0 0.0
        %710 = vmatprep.subr.mxu0 0.0
        %711 = vmatpush1.msra.mxu0 0.0
        %712 = vmatprep.mubr.f32.mxu0 0.0
        %713 = vmatmul.mubr.f32.gmra.mrb[0].mxu0 %v642
        %v714 = vpop.f32.mrb[0].mxu0
        %v715 = vadd.f32 0.0, %v714
        %v716 = vpop.f32.mrb[0].mxu0
        %v717 = vadd.f32 0.0, %v716
        %718 = vdwg.mxu0
        %v719 = vadd.f32 %v637, %v715
        %v720 = vadd.f32 %v638, %v717
        %721 = vrot.lane.b32.xlu0 %v207, 127
        %v722 = vpop.permute.xlu0 %721
        %723 = vrot.lane.b32.xlu0 %v244, 127
        %v724 = vpop.permute.xlu0 %723
        %v725 = vsel %vm454, %v722, %v724
        %v726 = vsel %vm454, %v724, %v722
        %v727 = vsel %vm459, %v725, 0.0
        %v728 = vsel %vm460, %v726, 0.0
        %s729 = scalar_lea.vmem %s1, 40
        %v730 = vld [vmem:[%s729] sm:$0xff]
        %v732 = vsel %vm288, %v730, 0
        %v735 = vsel %vm292, %v727, 0
        %v738 = vsel %vm292, %v728, 0
        %740 = vmatprep.subr.mxu0 %v738
        %741 = vmatpush1.msra.mxu0 %v735
        %742 = vmatprep.subr.mxu0 0.0
        %743 = vmatpush1.msra.mxu0 0.0
        %744 = vmatprep.subr.mxu0 0.0
        %745 = vmatpush1.msra.mxu0 0.0
        %746 = vmatprep.subr.mxu0 0.0
        %747 = vmatpush1.msra.mxu0 0.0
        %748 = vmatprep.subr.mxu0 0.0
        %749 = vmatpush1.msra.mxu0 0.0
        %750 = vmatprep.subr.mxu0 0.0
        %751 = vmatpush1.msra.mxu0 0.0
        %752 = vmatprep.subr.mxu0 0.0
        %753 = vmatpush1.msra.mxu0 0.0
        %754 = vmatprep.subr.mxu0 0.0
        %755 = vmatpush1.msra.mxu0 0.0
        %756 = vmatprep.subr.mxu0 0.0
        %757 = vmatpush1.msra.mxu0 0.0
        %758 = vmatprep.subr.mxu0 0.0
        %759 = vmatpush1.msra.mxu0 0.0
        %760 = vmatprep.subr.mxu0 0.0
        %761 = vmatpush1.msra.mxu0 0.0
        %762 = vmatprep.subr.mxu0 0.0
        %763 = vmatpush1.msra.mxu0 0.0
        %764 = vmatprep.subr.mxu0 0.0
        %765 = vmatpush1.msra.mxu0 0.0
        %766 = vmatprep.subr.mxu0 0.0
        %767 = vmatpush1.msra.mxu0 0.0
        %768 = vmatprep.subr.mxu0 0.0
        %769 = vmatpush1.msra.mxu0 0.0
        %770 = vmatprep.subr.mxu0 0.0
        %771 = vmatpush1.msra.mxu0 0.0
        %772 = vmatprep.subr.mxu0 0.0
        %773 = vmatpush1.msra.mxu0 0.0
        %774 = vmatprep.subr.mxu0 0.0
        %775 = vmatpush1.msra.mxu0 0.0
        %776 = vmatprep.subr.mxu0 0.0
        %777 = vmatpush1.msra.mxu0 0.0
        %778 = vmatprep.subr.mxu0 0.0
        %779 = vmatpush1.msra.mxu0 0.0
        %780 = vmatprep.subr.mxu0 0.0
        %781 = vmatpush1.msra.mxu0 0.0
        %782 = vmatprep.subr.mxu0 0.0
        %783 = vmatpush1.msra.mxu0 0.0
        %784 = vmatprep.subr.mxu0 0.0
        %785 = vmatpush1.msra.mxu0 0.0
        %786 = vmatprep.subr.mxu0 0.0
        %787 = vmatpush1.msra.mxu0 0.0
        %788 = vmatprep.subr.mxu0 0.0
        %789 = vmatpush1.msra.mxu0 0.0
        %790 = vmatprep.subr.mxu0 0.0
        %791 = vmatpush1.msra.mxu0 0.0
        %792 = vmatprep.subr.mxu0 0.0
        %793 = vmatpush1.msra.mxu0 0.0
        %794 = vmatprep.subr.mxu0 0.0
        %795 = vmatpush1.msra.mxu0 0.0
        %796 = vmatprep.subr.mxu0 0.0
        %797 = vmatpush1.msra.mxu0 0.0
        %798 = vmatprep.subr.mxu0 0.0
        %799 = vmatpush1.msra.mxu0 0.0
        %800 = vmatprep.subr.mxu0 0.0
        %801 = vmatpush1.msra.mxu0 0.0
        %802 = vmatprep.subr.mxu0 0.0
        %803 = vmatpush1.msra.mxu0 0.0
        %804 = vmatprep.mubr.f32.mxu0 0.0
        %805 = vmatmul.mubr.f32.gmra.mrb[0].mxu0 %v732
        %v806 = vpop.f32.mrb[0].mxu0
        %v807 = vadd.f32 0.0, %v806
        %v808 = vpop.f32.mrb[0].mxu0
        %v809 = vadd.f32 0.0, %v808
        %810 = vdwg.mxu0
        %v811 = vadd.f32 %v719, %v807
        %v812 = vadd.f32 %v720, %v809
        %813 = vrot.lane.b32.xlu0 %v270, 1
        %v814 = vpop.permute.xlu0 %813
        %815 = vrot.lane.b32.xlu0 %v271, 1
        %v816 = vpop.permute.xlu0 %815
        %v817 = vsel %vm276, %v814, %v816
        %v818 = vsel %vm276, %v816, %v814
        %v819 = vsel %vm281, %v818, 0.0
        %v820 = vsel %vm282, %v817, 0.0
        %s821 = scalar_lea.vmem %s1, 48
        %v822 = vld [vmem:[%s821] sm:$0xff]
        %v824 = vsel %vm288, %v822, 0
        %v827 = vsel %vm292, %v819, 0
        %v830 = vsel %vm292, %v820, 0
        %832 = vmatprep.subr.mxu0 %v830
        %833 = vmatpush1.msra.mxu0 %v827
        %834 = vmatprep.subr.mxu0 0.0
        %835 = vmatpush1.msra.mxu0 0.0
        %836 = vmatprep.subr.mxu0 0.0
        %837 = vmatpush1.msra.mxu0 0.0
        %838 = vmatprep.subr.mxu0 0.0
        %839 = vmatpush1.msra.mxu0 0.0
        %840 = vmatprep.subr.mxu0 0.0
        %841 = vmatpush1.msra.mxu0 0.0
        %842 = vmatprep.subr.mxu0 0.0
        %843 = vmatpush1.msra.mxu0 0.0
        %844 = vmatprep.subr.mxu0 0.0
        %845 = vmatpush1.msra.mxu0 0.0
        %846 = vmatprep.subr.mxu0 0.0
        %847 = vmatpush1.msra.mxu0 0.0
        %848 = vmatprep.subr.mxu0 0.0
        %849 = vmatpush1.msra.mxu0 0.0
        %850 = vmatprep.subr.mxu0 0.0
        %851 = vmatpush1.msra.mxu0 0.0
        %852 = vmatprep.subr.mxu0 0.0
        %853 = vmatpush1.msra.mxu0 0.0
        %854 = vmatprep.subr.mxu0 0.0
        %855 = vmatpush1.msra.mxu0 0.0
        %856 = vmatprep.subr.mxu0 0.0
        %857 = vmatpush1.msra.mxu0 0.0
        %858 = vmatprep.subr.mxu0 0.0
        %859 = vmatpush1.msra.mxu0 0.0
        %860 = vmatprep.subr.mxu0 0.0
        %861 = vmatpush1.msra.mxu0 0.0
        %862 = vmatprep.subr.mxu0 0.0
        %863 = vmatpush1.msra.mxu0 0.0
        %864 = vmatprep.subr.mxu0 0.0
        %865 = vmatpush1.msra.mxu0 0.0
        %866 = vmatprep.subr.mxu0 0.0
        %867 = vmatpush1.msra.mxu0 0.0
        %868 = vmatprep.subr.mxu0 0.0
        %869 = vmatpush1.msra.mxu0 0.0
        %870 = vmatprep.subr.mxu0 0.0
        %871 = vmatpush1.msra.mxu0 0.0
        %872 = vmatprep.subr.mxu0 0.0
        %873 = vmatpush1.msra.mxu0 0.0
        %874 = vmatprep.subr.mxu0 0.0
        %875 = vmatpush1.msra.mxu0 0.0
        %876 = vmatprep.subr.mxu0 0.0
        %877 = vmatpush1.msra.mxu0 0.0
        %878 = vmatprep.subr.mxu0 0.0
        %879 = vmatpush1.msra.mxu0 0.0
        %880 = vmatprep.subr.mxu0 0.0
        %881 = vmatpush1.msra.mxu0 0.0
        %882 = vmatprep.subr.mxu0 0.0
        %883 = vmatpush1.msra.mxu0 0.0
        %884 = vmatprep.subr.mxu0 0.0
        %885 = vmatpush1.msra.mxu0 0.0
        %886 = vmatprep.subr.mxu0 0.0
        %887 = vmatpush1.msra.mxu0 0.0
        %888 = vmatprep.subr.mxu0 0.0
        %889 = vmatpush1.msra.mxu0 0.0
        %890 = vmatprep.subr.mxu0 0.0
        %891 = vmatpush1.msra.mxu0 0.0
        %892 = vmatprep.subr.mxu0 0.0
        %893 = vmatpush1.msra.mxu0 0.0
        %894 = vmatprep.subr.mxu0 0.0
        %895 = vmatpush1.msra.mxu0 0.0
        %896 = vmatprep.mubr.f32.mxu0 0.0
        %897 = vmatmul.mubr.f32.gmra.mrb[0].mxu0 %v824
        %v898 = vpop.f32.mrb[0].mxu0
        %v899 = vadd.f32 0.0, %v898
        %v900 = vpop.f32.mrb[0].mxu0
        %v901 = vadd.f32 0.0, %v900
        %902 = vdwg.mxu0
        %v903 = vadd.f32 %v811, %v899
        %v904 = vadd.f32 %v812, %v901
        %s905 = scalar_lea.vmem %s1, 56
        %v906 = vld [vmem:[%s905] sm:$0xff]
        %v908 = vsel %vm288, %v906, 0
        %v911 = vsel %vm292, %v270, 0
        %v914 = vsel %vm292, %v271, 0
        %916 = vmatprep.subr.mxu0 %v914
        %917 = vmatpush1.msra.mxu0 %v911
        %918 = vmatprep.subr.mxu0 0.0
        %919 = vmatpush1.msra.mxu0 0.0
        %920 = vmatprep.subr.mxu0 0.0
        %921 = vmatpush1.msra.mxu0 0.0
        %922 = vmatprep.subr.mxu0 0.0
        %923 = vmatpush1.msra.mxu0 0.0
        %924 = vmatprep.subr.mxu0 0.0
        %925 = vmatpush1.msra.mxu0 0.0
        %926 = vmatprep.subr.mxu0 0.0
        %927 = vmatpush1.msra.mxu0 0.0
        %928 = vmatprep.subr.mxu0 0.0
        %929 = vmatpush1.msra.mxu0 0.0
        %930 = vmatprep.subr.mxu0 0.0
        %931 = vmatpush1.msra.mxu0 0.0
        %932 = vmatprep.subr.mxu0 0.0
        %933 = vmatpush1.msra.mxu0 0.0
        %934 = vmatprep.subr.mxu0 0.0
        %935 = vmatpush1.msra.mxu0 0.0
        %936 = vmatprep.subr.mxu0 0.0
        %937 = vmatpush1.msra.mxu0 0.0
        %938 = vmatprep.subr.mxu0 0.0
        %939 = vmatpush1.msra.mxu0 0.0
        %940 = vmatprep.subr.mxu0 0.0
        %941 = vmatpush1.msra.mxu0 0.0
        %942 = vmatprep.subr.mxu0 0.0
        %943 = vmatpush1.msra.mxu0 0.0
        %944 = vmatprep.subr.mxu0 0.0
        %945 = vmatpush1.msra.mxu0 0.0
        %946 = vmatprep.subr.mxu0 0.0
        %947 = vmatpush1.msra.mxu0 0.0
        %948 = vmatprep.subr.mxu0 0.0
        %949 = vmatpush1.msra.mxu0 0.0
        %950 = vmatprep.subr.mxu0 0.0
        %951 = vmatpush1.msra.mxu0 0.0
        %952 = vmatprep.subr.mxu0 0.0
        %953 = vmatpush1.msra.mxu0 0.0
        %954 = vmatprep.subr.mxu0 0.0
        %955 = vmatpush1.msra.mxu0 0.0
        %956 = vmatprep.subr.mxu0 0.0
        %957 = vmatpush1.msra.mxu0 0.0
        %958 = vmatprep.subr.mxu0 0.0
        %959 = vmatpush1.msra.mxu0 0.0
        %960 = vmatprep.subr.mxu0 0.0
        %961 = vmatpush1.msra.mxu0 0.0
        %962 = vmatprep.subr.mxu0 0.0
        %963 = vmatpush1.msra.mxu0 0.0
        %964 = vmatprep.subr.mxu0 0.0
        %965 = vmatpush1.msra.mxu0 0.0
        %966 = vmatprep.subr.mxu0 0.0
        %967 = vmatpush1.msra.mxu0 0.0
        %968 = vmatprep.subr.mxu0 0.0
        %969 = vmatpush1.msra.mxu0 0.0
        %970 = vmatprep.subr.mxu0 0.0
        %971 = vmatpush1.msra.mxu0 0.0
        %972 = vmatprep.subr.mxu0 0.0
        %973 = vmatpush1.msra.mxu0 0.0
        %974 = vmatprep.subr.mxu0 0.0
        %975 = vmatpush1.msra.mxu0 0.0
        %976 = vmatprep.subr.mxu0 0.0
        %977 = vmatpush1.msra.mxu0 0.0
        %978 = vmatprep.subr.mxu0 0.0
        %979 = vmatpush1.msra.mxu0 0.0
        %980 = vmatprep.mubr.f32.mxu0 0.0
        %981 = vmatmul.mubr.f32.gmra.mrb[0].mxu0 %v908
        %v982 = vpop.f32.mrb[0].mxu0
        %v983 = vadd.f32 0.0, %v982
        %v984 = vpop.f32.mrb[0].mxu0
        %v985 = vadd.f32 0.0, %v984
        %986 = vdwg.mxu0
        %v987 = vadd.f32 %v903, %v983
        %v988 = vadd.f32 %v904, %v985
        %989 = vrot.lane.b32.xlu0 %v270, 127
        %v990 = vpop.permute.xlu0 %989
        %991 = vrot.lane.b32.xlu0 %v271, 127
        %v992 = vpop.permute.xlu0 %991
        %v993 = vsel %vm454, %v990, %v992
        %v994 = vsel %vm454, %v992, %v990
        %v995 = vsel %vm459, %v993, 0.0
        %v996 = vsel %vm460, %v994, 0.0
        %s997 = scalar_lea.vmem %s1, 64
        %v998 = vld [vmem:[%s997] sm:$0xff]
        %v1000 = vsel %vm288, %v998, 0
        %v1003 = vsel %vm292, %v995, 0
        %v1006 = vsel %vm292, %v996, 0
        %1008 = vmatprep.subr.mxu0 %v1006
        %1009 = vmatpush1.msra.mxu0 %v1003
        %1010 = vmatprep.subr.mxu0 0.0
        %1011 = vmatpush1.msra.mxu0 0.0
        %1012 = vmatprep.subr.mxu0 0.0
        %1013 = vmatpush1.msra.mxu0 0.0
        %1014 = vmatprep.subr.mxu0 0.0
        %1015 = vmatpush1.msra.mxu0 0.0
        %1016 = vmatprep.subr.mxu0 0.0
        %1017 = vmatpush1.msra.mxu0 0.0
        %1018 = vmatprep.subr.mxu0 0.0
        %1019 = vmatpush1.msra.mxu0 0.0
        %1020 = vmatprep.subr.mxu0 0.0
        %1021 = vmatpush1.msra.mxu0 0.0
        %1022 = vmatprep.subr.mxu0 0.0
        %1023 = vmatpush1.msra.mxu0 0.0
        %1024 = vmatprep.subr.mxu0 0.0
        %1025 = vmatpush1.msra.mxu0 0.0
        %1026 = vmatprep.subr.mxu0 0.0
        %1027 = vmatpush1.msra.mxu0 0.0
        %1028 = vmatprep.subr.mxu0 0.0
        %1029 = vmatpush1.msra.mxu0 0.0
        %1030 = vmatprep.subr.mxu0 0.0
        %1031 = vmatpush1.msra.mxu0 0.0
        %1032 = vmatprep.subr.mxu0 0.0
        %1033 = vmatpush1.msra.mxu0 0.0
        %1034 = vmatprep.subr.mxu0 0.0
        %1035 = vmatpush1.msra.mxu0 0.0
        %1036 = vmatprep.subr.mxu0 0.0
        %1037 = vmatpush1.msra.mxu0 0.0
        %1038 = vmatprep.subr.mxu0 0.0
        %1039 = vmatpush1.msra.mxu0 0.0
        %1040 = vmatprep.subr.mxu0 0.0
        %1041 = vmatpush1.msra.mxu0 0.0
        %1042 = vmatprep.subr.mxu0 0.0
        %1043 = vmatpush1.msra.mxu0 0.0
        %1044 = vmatprep.subr.mxu0 0.0
        %1045 = vmatpush1.msra.mxu0 0.0
        %1046 = vmatprep.subr.mxu0 0.0
        %1047 = vmatpush1.msra.mxu0 0.0
        %1048 = vmatprep.subr.mxu0 0.0
        %1049 = vmatpush1.msra.mxu0 0.0
        %1050 = vmatprep.subr.mxu0 0.0
        %1051 = vmatpush1.msra.mxu0 0.0
        %1052 = vmatprep.subr.mxu0 0.0
        %1053 = vmatpush1.msra.mxu0 0.0
        %1054 = vmatprep.subr.mxu0 0.0
        %1055 = vmatpush1.msra.mxu0 0.0
        %1056 = vmatprep.subr.mxu0 0.0
        %1057 = vmatpush1.msra.mxu0 0.0
        %1058 = vmatprep.subr.mxu0 0.0
        %1059 = vmatpush1.msra.mxu0 0.0
        %1060 = vmatprep.subr.mxu0 0.0
        %1061 = vmatpush1.msra.mxu0 0.0
        %1062 = vmatprep.subr.mxu0 0.0
        %1063 = vmatpush1.msra.mxu0 0.0
        %1064 = vmatprep.subr.mxu0 0.0
        %1065 = vmatpush1.msra.mxu0 0.0
        %1066 = vmatprep.subr.mxu0 0.0
        %1067 = vmatpush1.msra.mxu0 0.0
        %1068 = vmatprep.subr.mxu0 0.0
        %1069 = vmatpush1.msra.mxu0 0.0
        %1070 = vmatprep.subr.mxu0 0.0
        %1071 = vmatpush1.msra.mxu0 0.0
        %1072 = vmatprep.mubr.f32.mxu0 0.0
        %1073 = vmatmul.mubr.f32.gmra.mrb[0].mxu0 %v1000
        %v1074 = vpop.f32.mrb[0].mxu0
        %v1075 = vadd.f32 0.0, %v1074
        %v1076 = vpop.f32.mrb[0].mxu0
        %v1077 = vadd.f32 0.0, %v1076
        %1078 = vdwg.mxu0
        %v1079 = vadd.f32 %v987, %v1075
        %v1080 = vadd.f32 %v988, %v1077
        %v1081 = vld [vmem:[%s2] sm:$0xff]
        %1083 = vset.pattern.permute.xlu0 0
        %1084 = vperm.xlu0 %1083, %v1081
        %v1085 = vpop.permute.xlu0 %1084
        %v1087 = vadd.f32 %v1079, %v1085
        %v1088 = vadd.f32 %v1080, %v1085
        %v1091 = vcombine.low %v1087, %v1088
        %1093 = vst [vmem:[%s194] sm:$0xff] %v1091
        %v1094 = vcombine.high %v1087, %v1088
        %1096 = vst [vmem:[%s201] sm:$0xff] %v1094
        %s1097 = sand.u32 %s98, 1
        %s1098 = scalar_lea.sflag [#allocation3], %s1097
        %s1099 = sand.u32 %s98, 1
        %s1100 = smul.addr %s1099, 8
        %s1101 = scalar_lea.vmem [#allocation2], %s1100
        %s1102 = sand.u32 %s124, 1
        %s1103 = scalar_lea.sflag [#allocation5], %s1102
        %s1104 = sand.u32 %s124, 1
        %s1105 = smul.addr %s1104, 8
        %s1106 = scalar_lea.vmem [#allocation4], %s1105
        // Predicated region
        $region33: #{tpu_custom_call.1} parent=31 // pred_check
          %p1107 = pneg %p108
        $region34: #{tpu_custom_call.1} parent=31 // pred_check_branch
          %1109 = sbr.rel (%p1107) target = $region36
        $region35: #{tpu_custom_call.1} parent=31 // pred_region
          %s1111 = ssub.s32 128, 128
          %1112 = vsyncadd %s1098, %s1111
          %s1113 = smul.addr %s22, 2
          %s1114 = smul.addr %s1113, 64
          %s1115 = scalar_lea.hbm %s3, %s1114
          %s1117 = sshll.u32 %s1101, 4
          %s1118 = int_to_ptr.vmem [resolvable:$true] %s1117
          %1120 = dma.vmem_to_hbm [thread:$0]  %s1118, 128, %s1115, %s1098
        $region36: #{tpu_custom_call.1} parent=31 // pred_fallthru
          _
        // Predicated region
        $region37: #{tpu_custom_call.1} parent=31 // pred_check
          %p1121 = pneg %p134
        $region38: #{tpu_custom_call.1} parent=31 // pred_check_branch
          %1123 = sbr.rel (%p1121) target = $region40
        $region39: #{tpu_custom_call.1} parent=31 // pred_region
          %s1125 = ssub.s32 128, 128
          %1126 = vsyncadd %s1103, %s1125
          %s1127 = smul.addr %s22, 2
          %s1128 = smul.addr %s1127, 64
          %s1129 = scalar_lea.hbm %s4, %s1128
          %s1131 = sshll.u32 %s1106, 4
          %s1132 = int_to_ptr.vmem [resolvable:$true] %s1131
          %1134 = dma.vmem_to_hbm [thread:$0]  %s1132, 128, %s1129, %s1103
        $region40: #{tpu_custom_call.1} parent=31 // pred_fallthru
          _
      $region32: #{tpu_custom_call.1} parent=5 // pred_fallthru
        _
      %p1135 = scmp.le.s32.totalorder 2, %s17
      // Predicated region
      $region41: #{tpu_custom_call.1} parent=5 // pred_check
        %p1136 = pneg %p1135
      $region42: #{tpu_custom_call.1} parent=5 // pred_check_branch
        %1138 = sbr.rel (%p1136) target = $region44
      $region43: #{tpu_custom_call.1} parent=5 // pred_region
        %s1139 = ssub.s32 %s17, 2
        // Predicated region
        $region45: #{tpu_custom_call.1} parent=43 // pred_check
          %p1140 = pneg %p114
        $region46: #{tpu_custom_call.1} parent=43 // pred_check_branch
          %1142 = sbr.rel (%p1140) target = $region48
        $region47: #{tpu_custom_call.1} parent=43 // pred_region
          %s1143 = sand.u32 %s99, 1
          %s1144 = scalar_lea.sflag [#allocation3], %s1143
          %s1145 = sand.u32 %s99, 1
          %s1146 = smul.addr %s1145, 8
          %s1147 = scalar_lea.vmem [#allocation2], %s1146
          %1148 = dma.done %s1144, 128
        $region48: #{tpu_custom_call.1} parent=43 // pred_fallthru
          _
        // Predicated region
        $region49: #{tpu_custom_call.1} parent=43 // pred_check
          %p1149 = pneg %p140
        $region50: #{tpu_custom_call.1} parent=43 // pred_check_branch
          %1151 = sbr.rel (%p1149) target = $region52
        $region51: #{tpu_custom_call.1} parent=43 // pred_region
          %s1152 = sand.u32 %s125, 1
          %s1153 = scalar_lea.sflag [#allocation5], %s1152
          %s1154 = sand.u32 %s125, 1
          %s1155 = smul.addr %s1154, 8
          %s1156 = scalar_lea.vmem [#allocation4], %s1155
          %1157 = dma.done %s1153, 128
        $region52: #{tpu_custom_call.1} parent=43 // pred_fallthru
          _
      $region44: #{tpu_custom_call.1} parent=5 // pred_fallthru
        _
    $region6: #{tpu_custom_call.1} parent=1 // loop_footer
      %s21 = sadd.s32 1, %s17
    $region7: #{tpu_custom_call.1} parent=1 // loop_footer_branch
      %16 = sbr.rel target = $region3
    $region8: #{tpu_custom_call.1} parent=1 // loop_exit
      _
    %1158 = vsyncpa [#allocation3], 1
    %s1159 = scalar_lea.sflag [#allocation3], 1
    %1160 = vsyncpa %s1159, 1
    %1161 = vsyncpa [#allocation5], 1
    %s1162 = scalar_lea.sflag [#allocation5], 1
    %1163 = vsyncpa %s1162, 1

</llo_original>
